<compile_context>
chip_gen: v7x
topology: tpu7x:2x2x1
jax: 0.10.0
libtpu: 0.0.40
codegen_flags: <defaults>
</compile_context>

<pallas_src>
import functools
import math

import jax
import jax.numpy as jnp
from jax.experimental import pallas as pl
from jax.experimental.pallas import tpu as pltpu


def _round_up(x, m):
    return (x + m - 1) // m * m


def _generator_kernel(x_ref, w_ref, b_ref, o_ref, m_ref, l_ref, e_ref):
    # x_ref: (tm, Dp)   w_ref: (Dp, tv)   b_ref: (1, tv)
    # o_ref: (tm, Vp)   m_ref/l_ref: (tm, 1) f32   e_ref: (tm, Vp) f32
    j = pl.program_id(1)
    nj = pl.num_programs(1)
    tv = w_ref.shape[1]

    @pl.when(j == 0)
    def _init():
        m_ref[...] = jnp.full(m_ref.shape, -jnp.inf, dtype=jnp.float32)
        l_ref[...] = jnp.zeros(l_ref.shape, dtype=jnp.float32)

    # Logits for this vocab tile (f32 accumulation on the MXU).
    logits = jnp.dot(x_ref[...], w_ref[...], preferred_element_type=jnp.float32)
    logits = logits + b_ref[...].astype(jnp.float32)

    # Online softmax update.
    m_old = m_ref[...]
    m_new = jnp.maximum(m_old, jnp.max(logits, axis=-1, keepdims=True))
    scale = jnp.exp(m_old - m_new)          # (tm, 1); == 0 on the first step
    p = jnp.exp(logits - m_new)             # (tm, tv)

    m_ref[...] = m_new
    l_ref[...] = scale * l_ref[...] + jnp.sum(p, axis=-1, keepdims=True)

    # Rescale everything staged so far to the new running max, then stage this
    # vocab block. (Columns not yet written hold junk but each gets overwritten
    # exactly once at its own step, so the final buffer is clean.)
    e_ref[...] = e_ref[...] * scale
    col = pl.multiple_of(j * tv, tv)
    e_ref[:, pl.ds(col, tv)] = p

    @pl.when(j == nj - 1)
    def _finalize():
        l = l_ref[...]
        inv = pl.reciprocal(l, approx=True)     # EUP slot
        inv = inv * (2.0 - l * inv)             # one Newton step -> ~f32 accurate
        o_ref[...] = (e_ref[...] * inv).astype(o_ref.dtype)


@functools.partial(jax.jit, static_argnames=("tm_max", "tv_max"))
def generator_forward(x, weight_t, bias, *, tm_max=256, tv_max=1024):
    """softmax(x @ weight_t + bias, axis=-1).

    x:        [..., model_dim]
    weight_t: [model_dim, vocab]   (PyTorch nn.Linear weight.T)
    bias:     [vocab]
    returns:  [..., vocab], same float dtype as x
    """
    *lead, d = x.shape
    v = weight_t.shape[1]
    m = math.prod(lead) if lead else 1

    x2d = x.reshape(m, d)

    itemsize = jnp.dtype(x.dtype).itemsize
    sub = 8 if itemsize >= 4 else 16            # sublane packing for f32 / bf16

    # Tile sizes: as big as is useful, never bigger than the (padded) problem.
    tm = min(tm_max, _round_up(m, sub))
    m_pad = _round_up(m, tm)
    tv = min(tv_max, _round_up(v, 128))
    v_pad = _round_up(v, tv)
    d_pad = _round_up(d, 128)                   # fill the MXU contraction dim

    # Pad rows / features with zeros (no effect on logits), pad vocab with
    # zero weights and a very negative bias so padded columns vanish in softmax.
    if m_pad != m or d_pad != d:
        x2d = jnp.pad(x2d, ((0, m_pad - m), (0, d_pad - d)))
    w = weight_t
    b = bias
    if d_pad != d:
        w = jnp.pad(w, ((0, d_pad - d), (0, 0)))
    if v_pad != v:
        w = jnp.pad(w, ((0, 0), (0, v_pad - v)))
        b = jnp.pad(b, (0, v_pad - v), constant_values=-1e30)
    b2d = b.reshape(1, v_pad)

    n_i = m_pad // tm
    n_j = v_pad // tv

    # Advisory cost for the XLA scheduler.
    cost = pl.CostEstimate(
        flops=2 * m_pad * d_pad * v_pad,
        transcendentals=m_pad * v_pad,
        bytes_accessed=(x2d.size * itemsize
                        + w.size * jnp.dtype(w.dtype).itemsize
                        + b2d.size * jnp.dtype(b2d.dtype).itemsize
                        + m_pad * v_pad * itemsize),
    )

    # Explicit VMEM budget (stays above the 32 MiB scoped default, below the
    # 64 MiB of a v7x TensorCore).
    vmem_bytes = (2 * (tm * d_pad + d_pad * tv + tv) * itemsize   # pipelined inputs
                  + 2 * tm * v_pad * itemsize                     # resident output block
                  + tm * v_pad * 4 + 2 * tm * 4)                  # f32 scratch
    vmem_limit = max(32 * 1024 * 1024,
                     min(int(vmem_bytes * 1.25) + (1 << 20), 64 * 1024 * 1024))

    out = pl.pallas_call(
        _generator_kernel,
        out_shape=jax.ShapeDtypeStruct((m_pad, v_pad), x.dtype),
        grid_spec=pltpu.PrefetchScalarGridSpec(
            num_scalar_prefetch=0,
            grid=(n_i, n_j),
            in_specs=[
                pl.BlockSpec((tm, d_pad), lambda i, j: (i, 0)),   # x row tile (resident over j)
                pl.BlockSpec((d_pad, tv), lambda i, j: (0, j)),   # weight streamed over vocab
                pl.BlockSpec((1, tv), lambda i, j: (0, j)),       # bias tile
            ],
            out_specs=pl.BlockSpec((tm, v_pad), lambda i, j: (i, 0)),
            scratch_shapes=[
                pltpu.VMEM((tm, 1), jnp.float32),       # running max
                pltpu.VMEM((tm, 1), jnp.float32),       # running sum
                pltpu.VMEM((tm, v_pad), jnp.float32),   # staged unnormalized exp
            ],
        ),
        compiler_params=pltpu.CompilerParams(
            dimension_semantics=("parallel", "arbitrary"),
            vmem_limit_bytes=vmem_limit,
        ),
        cost_estimate=cost,
    )(x2d, w, b2d)

    out = out[:m, :v]
    return out.reshape(*lead, v)


def init_generator_params(key, model_dim, vocab_size, dtype=jnp.float32):
    """Deterministic init mirroring nn.Linear default (U[-1/sqrt(in), 1/sqrt(in)])."""
    kw, kb = jax.random.split(key)
    bound = 1.0 / (model_dim ** 0.5)
    # stored already transposed: [model_dim, vocab]
    weight_t = jax.random.uniform(
        kw, (model_dim, vocab_size), dtype=dtype, minval=-bound, maxval=bound
    )
    bias = jax.random.uniform(
        kb, (vocab_size,), dtype=dtype, minval=-bound, maxval=bound
    )
    return weight_t, bias


if __name__ == "__main__":
    key = jax.random.PRNGKey(0)

    # Case 1: the nominal small demo shapes.
    batch, seq, model_dim, vocab_size = 2, 8, 32, 128
    kx, kp, key = jax.random.split(key, 3)
    x = jax.random.normal(kx, (batch, seq, model_dim), dtype=jnp.float32)
    weight_t, bias = init_generator_params(kp, model_dim, vocab_size)

    probs = generator_forward(x, weight_t, bias)
    probs = jax.block_until_ready(probs)

    ref = jax.nn.softmax(jnp.einsum("bsd,dv->bsv", x, weight_t) + bias, axis=-1)
    assert probs.shape == (batch, seq, vocab_size)
    assert jnp.allclose(probs, ref, atol=1e-5, rtol=1e-5)
    assert jnp.allclose(jnp.sum(probs, axis=-1), 1.0, atol=1e-5)

    # Case 2: ragged shapes exercising row / feature / vocab padding paths.
    batch2, seq2, model_dim2, vocab_size2 = 3, 5, 48, 200
    kx2, kp2, key = jax.random.split(key, 3)
    x2 = jax.random.normal(kx2, (batch2, seq2, model_dim2), dtype=jnp.float32)
    weight_t2, bias2 = init_generator_params(kp2, model_dim2, vocab_size2)

    probs2 = generator_forward(x2, weight_t2, bias2)
    probs2 = jax.block_until_ready(probs2)

    ref2 = jax.nn.softmax(jnp.einsum("bsd,dv->bsv", x2, weight_t2) + bias2, axis=-1)
    assert probs2.shape == (batch2, seq2, vocab_size2)
    assert jnp.allclose(probs2, ref2, atol=1e-5, rtol=1e-5)
    assert jnp.allclose(jnp.sum(probs2, axis=-1), 1.0, atol=1e-5)

    print("KERNEL_OK")
</pallas_src>

<mosaic_0001>
module attributes {stable_mosaic.version = 11 : i64} {
  func.func @_generator_kernel(%arg0: i32, %arg1: i32, %arg2: memref<16x128xf32, #tpu.memory_space<vmem>>, %arg3: memref<128x128xf32, #tpu.memory_space<vmem>>, %arg4: memref<1x128xf32, #tpu.memory_space<vmem>>, %arg5: memref<16x128xf32, #tpu.memory_space<vmem>>, %arg6: memref<16x1xf32, #tpu.memory_space<vmem>>, %arg7: memref<16x1xf32, #tpu.memory_space<vmem>>, %arg8: memref<16x128xf32, #tpu.memory_space<vmem>>) attributes {dimension_semantics = [#tpu.dimension_semantics<parallel>, #tpu.dimension_semantics<arbitrary>], iteration_bounds = array<i64: 1, 1>, scalar_prefetch = 0 : i64, scratch_operands = 3 : i64, tpu.core_type = #tpu.core_type<tc>, window_params = [{transform_indices = @transform_0, window_bounds = array<i64: 16, 128>}, {transform_indices = @transform_1, window_bounds = array<i64: 128, 128>}, {transform_indices = @transform_2, window_bounds = array<i64: 1, 128>}, {transform_indices = @transform_3, window_bounds = array<i64: 16, 128>}]} {
    %c0_i32 = arith.constant 0 : i32
    %0 = arith.cmpi eq, %arg1, %c0_i32 : i32
    %1 = arith.extui %0 : i1 to i32
    %c0_i32_0 = arith.constant 0 : i32
    %2 = arith.cmpi ne, %1, %c0_i32_0 : i32
    scf.if %2 {
      %cst_23 = arith.constant 0xFF800000 : f32
      %36 = vector.broadcast %cst_23 : f32 to vector<16x1xf32>
      %c0_24 = arith.constant 0 : index
      %c0_25 = arith.constant 0 : index
      %37 = vector.load %arg6[%c0_24, %c0_25] : memref<16x1xf32, #tpu.memory_space<vmem>>, vector<16x1xf32>
      tpu.vector_store %arg6[%c0_24, %c0_25], %36 {strides = array<i32>} : memref<16x1xf32, #tpu.memory_space<vmem>>, vector<16x1xf32>,
      %cst_26 = arith.constant 0.000000e+00 : f32
      %38 = vector.broadcast %cst_26 : f32 to vector<16x1xf32>
      %c0_27 = arith.constant 0 : index
      %c0_28 = arith.constant 0 : index
      %39 = vector.load %arg7[%c0_27, %c0_28] : memref<16x1xf32, #tpu.memory_space<vmem>>, vector<16x1xf32>
      tpu.vector_store %arg7[%c0_27, %c0_28], %38 {strides = array<i32>} : memref<16x1xf32, #tpu.memory_space<vmem>>, vector<16x1xf32>,
    } else {
    }
    %c0 = arith.constant 0 : index
    %c0_1 = arith.constant 0 : index
    %3 = vector.load %arg2[%c0, %c0_1] : memref<16x128xf32, #tpu.memory_space<vmem>>, vector<16x128xf32>
    %c0_2 = arith.constant 0 : index
    %c0_3 = arith.constant 0 : index
    %4 = vector.load %arg3[%c0_2, %c0_3] : memref<128x128xf32, #tpu.memory_space<vmem>>, vector<128x128xf32>
    %cst = arith.constant dense<0.000000e+00> : vector<16x128xf32>
    %5 = tpu.matmul %3, %4, %cst {dimension_numbers = #tpu.dot_dimension_numbers<[1], [0], [0], [1], [0, 0, 1, 1], [], []>} : vector<16x128xf32>, vector<128x128xf32>, vector<16x128xf32> -> vector<16x128xf32>
    %c0_4 = arith.constant 0 : index
    %c0_5 = arith.constant 0 : index
    %6 = vector.load %arg4[%c0_4, %c0_5] : memref<1x128xf32, #tpu.memory_space<vmem>>, vector<1x128xf32>
    %7 = vector.broadcast %6 : vector<1x128xf32> to vector<16x128xf32>
    %8 = arith.addf %5, %7 : vector<16x128xf32>
    %c0_6 = arith.constant 0 : index
    %c0_7 = arith.constant 0 : index
    %9 = vector.load %arg6[%c0_6, %c0_7] : memref<16x1xf32, #tpu.memory_space<vmem>>, vector<16x1xf32>
    %cst_8 = arith.constant dense<0xFF800000> : vector<16xf32>
    %10 = vector.multi_reduction <maximumf>, %8, %cst_8 [1] : vector<16x128xf32> to vector<16xf32>
    %11 = vector.shape_cast %10 : vector<16xf32> to vector<16x1xf32>
    %12 = arith.maximumf %9, %11 : vector<16x1xf32>
    %13 = arith.subf %9, %12 : vector<16x1xf32>
    %14 = math.exp %13 : vector<16x1xf32>
    %15 = vector.broadcast %12 : vector<16x1xf32> to vector<16x128xf32>
    %16 = arith.subf %8, %15 : vector<16x128xf32>
    %17 = math.exp %16 : vector<16x128xf32>
    %c0_9 = arith.constant 0 : index
    %c0_10 = arith.constant 0 : index
    %18 = vector.load %arg6[%c0_9, %c0_10] : memref<16x1xf32, #tpu.memory_space<vmem>>, vector<16x1xf32>
    tpu.vector_store %arg6[%c0_9, %c0_10], %12 {strides = array<i32>} : memref<16x1xf32, #tpu.memory_space<vmem>>, vector<16x1xf32>,
    %c0_11 = arith.constant 0 : index
    %c0_12 = arith.constant 0 : index
    %19 = vector.load %arg7[%c0_11, %c0_12] : memref<16x1xf32, #tpu.memory_space<vmem>>, vector<16x1xf32>
    %20 = arith.mulf %14, %19 : vector<16x1xf32>
    %cst_13 = arith.constant dense<0.000000e+00> : vector<16xf32>
    %21 = vector.multi_reduction <add>, %17, %cst_13 [1] : vector<16x128xf32> to vector<16xf32>
    %22 = vector.shape_cast %21 : vector<16xf32> to vector<16x1xf32>
    %23 = arith.addf %20, %22 : vector<16x1xf32>
    %c0_14 = arith.constant 0 : index
    %c0_15 = arith.constant 0 : index
    %24 = vector.load %arg7[%c0_14, %c0_15] : memref<16x1xf32, #tpu.memory_space<vmem>>, vector<16x1xf32>
    tpu.vector_store %arg7[%c0_14, %c0_15], %23 {strides = array<i32>} : memref<16x1xf32, #tpu.memory_space<vmem>>, vector<16x1xf32>,
    %c0_16 = arith.constant 0 : index
    %c0_17 = arith.constant 0 : index
    %25 = vector.load %arg8[%c0_16, %c0_17] : memref<16x128xf32, #tpu.memory_space<vmem>>, vector<16x128xf32>
    %26 = vector.broadcast %14 : vector<16x1xf32> to vector<16x128xf32>
    %27 = arith.mulf %25, %26 : vector<16x128xf32>
    %c0_18 = arith.constant 0 : index
    %c0_19 = arith.constant 0 : index
    %28 = vector.load %arg8[%c0_18, %c0_19] : memref<16x128xf32, #tpu.memory_space<vmem>>, vector<16x128xf32>
    tpu.vector_store %arg8[%c0_18, %c0_19], %27 {strides = array<i32>} : memref<16x128xf32, #tpu.memory_space<vmem>>, vector<16x128xf32>,
    %c128_i32 = arith.constant 128 : i32
    %29 = arith.muli %arg1, %c128_i32 : i32
    %30 = tpu.assume_multiple %29, 128 : i32
    %c0_20 = arith.constant 0 : index
    %31 = arith.index_cast %30 : i32 to index
    %32 = vector.load %arg8[%c0_20, %31] : memref<16x128xf32, #tpu.memory_space<vmem>>, vector<16x128xf32>
    tpu.vector_store %arg8[%c0_20, %31], %17 {strides = array<i32>} : memref<16x128xf32, #tpu.memory_space<vmem>>, vector<16x128xf32>,
    %c0_i32_21 = arith.constant 0 : i32
    %33 = arith.cmpi eq, %arg1, %c0_i32_21 : i32
    %34 = arith.extui %33 : i1 to i32
    %c0_i32_22 = arith.constant 0 : i32
    %35 = arith.cmpi ne, %34, %c0_i32_22 : i32
    scf.if %35 {
      %c0_23 = arith.constant 0 : index
      %c0_24 = arith.constant 0 : index
      %36 = vector.load %arg7[%c0_23, %c0_24] : memref<16x1xf32, #tpu.memory_space<vmem>>, vector<16x1xf32>
      %37 = tpu.reciprocal %36 {approx = true} : vector<16x1xf32> -> vector<16x1xf32>
      %38 = arith.mulf %36, %37 : vector<16x1xf32>
      %cst_25 = arith.constant 2.000000e+00 : f32
      %39 = vector.broadcast %cst_25 : f32 to vector<16x1xf32>
      %40 = arith.subf %39, %38 : vector<16x1xf32>
      %41 = arith.mulf %37, %40 : vector<16x1xf32>
      %c0_26 = arith.constant 0 : index
      %c0_27 = arith.constant 0 : index
      %42 = vector.load %arg8[%c0_26, %c0_27] : memref<16x128xf32, #tpu.memory_space<vmem>>, vector<16x128xf32>
      %43 = vector.broadcast %41 : vector<16x1xf32> to vector<16x128xf32>
      %44 = arith.mulf %42, %43 : vector<16x128xf32>
      %c0_28 = arith.constant 0 : index
      %c0_29 = arith.constant 0 : index
      %45 = vector.load %arg5[%c0_28, %c0_29] : memref<16x128xf32, #tpu.memory_space<vmem>>, vector<16x128xf32>
      tpu.vector_store %arg5[%c0_28, %c0_29], %44 {strides = array<i32>} : memref<16x128xf32, #tpu.memory_space<vmem>>, vector<16x128xf32>,
    } else {
    }
    return
  }
  func.func @transform_0(%arg0: i32, %arg1: i32) -> (i32, i32) {
    %c0_i32 = arith.constant 0 : i32
    %c0_i32_0 = arith.constant 0 : i32
    return %arg0, %c0_i32 : i32, i32
  }
  func.func @transform_1(%arg0: i32, %arg1: i32) -> (i32, i32) {
    %c0_i32 = arith.constant 0 : i32
    %c0_i32_0 = arith.constant 0 : i32
    return %c0_i32, %arg1 : i32, i32
  }
  func.func @transform_2(%arg0: i32, %arg1: i32) -> (i32, i32) {
    %c0_i32 = arith.constant 0 : i32
    %c0_i32_0 = arith.constant 0 : i32
    return %c0_i32, %arg1 : i32, i32
  }
  func.func @transform_3(%arg0: i32, %arg1: i32) -> (i32, i32) {
    %c0_i32 = arith.constant 0 : i32
    %c0_i32_0 = arith.constant 0 : i32
    return %arg0, %c0_i32 : i32, i32
  }
}

</mosaic_0001>

<llo_original>
// kernel: generator_forward.1
$region0: #{generator_forward.1}
  #allocation0 [shape = 'u32[]', space=smem, size = 0x4, offset = 0x4, fixed_abs, tag = 'smem constant byte address 0x4 - core index']
  #allocation1 [shape = 'u32[144,128]{1,0:T(1,128)}', space=vmem, size = 0x12000, scoped, tag = 'internal scratch']
  #allocation2 [shape = 'f32[16,1]{1,0:T(8,128)}', space=vmem, size = 0x2000, scoped, tag = 'scratch operand']
  #allocation3 [shape = 'f32[16,1]{1,0:T(8,128)}', space=vmem, size = 0x2000, scoped, tag = 'scratch operand']
  #allocation4 [shape = 'f32[16,128]{1,0:T(8,128)}', space=vmem, size = 0x2000, scoped, tag = 'scratch operand']
  %s0 = inlined_call_operand.vmem [shape: f32[16,128], index: 0, kind: input, shape index: {}]
  %s1 = inlined_call_operand.vmem [shape: f32[128,128], index: 1, kind: input, shape index: {}]
  %s2 = inlined_call_operand.vmem [shape: f32[1,128], index: 2, kind: input, shape index: {}]
  %s3 = inlined_call_operand.hbm [shape: f32[16,128], index: 3, kind: output, shape index: {}]
  %s4 = sld [smem:[#allocation0]]
  $region30: #{generator_forward.1} parent=0
    _
  %s6 = ssub.s32 1, %s4
  %s7 = scalar_select 0, %s6, %s4
  $region1: #{generator_forward.1} parent=0
    #allocation5 [shape = 'u8[8192]{0}', space=vmem, size = 0x2000, scoped, tag = 'output window, operand 0, single buffered']
    #allocation6 [shape = 's32[1]{0}', space=sflag, size = 0x4, scoped, tag = 'scoped memory for generator_forward.1']
    %8 = vsyncpa [#allocation6], 0
    // Predicated region
    $region2: #{generator_forward.1} parent=1 // pred_check
      _
    $region3: #{generator_forward.1} parent=1 // pred_check_branch
      %10 = sbr.rel (0) target = $region5
    $region4: #{generator_forward.1} parent=1 // pred_region
      _
    $region5: #{generator_forward.1} parent=1 // pred_fallthru
      _
    // Predicated region
    $region6: #{generator_forward.1} parent=1 // pred_check
      _
    $region7: #{generator_forward.1} parent=1 // pred_check_branch
      %12 = sbr.rel (0) target = $region9
    $region8: #{generator_forward.1} parent=1 // pred_region
      _
    $region9: #{generator_forward.1} parent=1 // pred_fallthru
      _
    // Predicated region
    $region10: #{generator_forward.1} parent=1 // pred_check
      _
    $region11: #{generator_forward.1} parent=1 // pred_check_branch
      %14 = sbr.rel (0) target = $region13
    $region12: #{generator_forward.1} parent=1 // pred_region
      _
    $region13: #{generator_forward.1} parent=1 // pred_fallthru
      _
    %p15 = scmp.eq.s32.totalorder 0, 0
    // Predicated region
    $region14: #{generator_forward.1} parent=1 // pred_check
      %p16 = pneg %p15
    $region15: #{generator_forward.1} parent=1 // pred_check_branch
      %18 = sbr.rel (%p16) target = $region17
    $region16: #{generator_forward.1} parent=1 // pred_region
      %vm19 = vcmask 7168
      %20 = vst.msk [vmem:[#allocation2] sm:$0xff] %vm19, -inf
      %21 = vst.msk [vmem:[#allocation2 + $0x8] sm:$0xff] %vm19, -inf
      %22 = vst.msk [vmem:[#allocation3] sm:$0xff] %vm19, 0.0
      %23 = vst.msk [vmem:[#allocation3 + $0x8] sm:$0xff] %vm19, 0.0
    $region17: #{generator_forward.1} parent=1 // pred_fallthru
      _
    %v24 = vld [vmem:[%s0] sm:$0xff]
    %v25 = vld [vmem:[%s0 + $0x8] sm:$0xff]
    %v26 = vld [vmem:[%s1] sm:$0xff]
    %v27 = vld [vmem:[%s1 + $0x8] sm:$0xff]
    %v28 = vld [vmem:[%s1 + $0x10] sm:$0xff]
    %v29 = vld [vmem:[%s1 + $0x18] sm:$0xff]
    %v30 = vld [vmem:[%s1 + $0x20] sm:$0xff]
    %v31 = vld [vmem:[%s1 + $0x28] sm:$0xff]
    %v32 = vld [vmem:[%s1 + $0x30] sm:$0xff]
    %v33 = vld [vmem:[%s1 + $0x38] sm:$0xff]
    %v34 = vld [vmem:[%s1 + $0x40] sm:$0xff]
    %v35 = vld [vmem:[%s1 + $0x48] sm:$0xff]
    %v36 = vld [vmem:[%s1 + $0x50] sm:$0xff]
    %v37 = vld [vmem:[%s1 + $0x58] sm:$0xff]
    %v38 = vld [vmem:[%s1 + $0x60] sm:$0xff]
    %v39 = vld [vmem:[%s1 + $0x68] sm:$0xff]
    %v40 = vld [vmem:[%s1 + $0x70] sm:$0xff]
    %v41 = vld [vmem:[%s1 + $0x78] sm:$0xff]
    %v42 = vld [vmem:[%s2] sm:$0x1]
    %v44 = vlaneseq
    %v45 = vshrl.u32 %v44, 7
    %v46 = vsub.s32 0, %v45
    %v47 = vrot.slane %v42, %v46
    %49 = vmatprep.subr.mxu0 0.0
    %50 = vmatpush1.msra.mxu0 %v26
    %51 = vmatprep.subr.mxu0 0.0
    %52 = vmatpush1.msra.mxu0 %v27
    %53 = vmatprep.subr.mxu0 0.0
    %54 = vmatpush1.msra.mxu0 %v28
    %55 = vmatprep.subr.mxu0 0.0
    %56 = vmatpush1.msra.mxu0 %v29
    %57 = vmatprep.subr.mxu0 0.0
    %58 = vmatpush1.msra.mxu0 %v30
    %59 = vmatprep.subr.mxu0 0.0
    %60 = vmatpush1.msra.mxu0 %v31
    %61 = vmatprep.subr.mxu0 0.0
    %62 = vmatpush1.msra.mxu0 %v32
    %63 = vmatprep.subr.mxu0 0.0
    %64 = vmatpush1.msra.mxu0 %v33
    %65 = vmatprep.subr.mxu0 0.0
    %66 = vmatpush1.msra.mxu0 %v34
    %67 = vmatprep.subr.mxu0 0.0
    %68 = vmatpush1.msra.mxu0 %v35
    %69 = vmatprep.subr.mxu0 0.0
    %70 = vmatpush1.msra.mxu0 %v36
    %71 = vmatprep.subr.mxu0 0.0
    %72 = vmatpush1.msra.mxu0 %v37
    %73 = vmatprep.subr.mxu0 0.0
    %74 = vmatpush1.msra.mxu0 %v38
    %75 = vmatprep.subr.mxu0 0.0
    %76 = vmatpush1.msra.mxu0 %v39
    %77 = vmatprep.subr.mxu0 0.0
    %78 = vmatpush1.msra.mxu0 %v40
    %79 = vmatprep.subr.mxu0 0.0
    %80 = vmatpush1.msra.mxu0 %v41
    %81 = vmatprep.subr.mxu0 0.0
    %82 = vmatpush1.msra.mxu0 0.0
    %83 = vmatprep.subr.mxu0 0.0
    %84 = vmatpush1.msra.mxu0 0.0
    %85 = vmatprep.subr.mxu0 0.0
    %86 = vmatpush1.msra.mxu0 0.0
    %87 = vmatprep.subr.mxu0 0.0
    %88 = vmatpush1.msra.mxu0 0.0
    %89 = vmatprep.subr.mxu0 0.0
    %90 = vmatpush1.msra.mxu0 0.0
    %91 = vmatprep.subr.mxu0 0.0
    %92 = vmatpush1.msra.mxu0 0.0
    %93 = vmatprep.subr.mxu0 0.0
    %94 = vmatpush1.msra.mxu0 0.0
    %95 = vmatprep.subr.mxu0 0.0
    %96 = vmatpush1.msra.mxu0 0.0
    %97 = vmatprep.subr.mxu0 0.0
    %98 = vmatpush1.msra.mxu0 0.0
    %99 = vmatprep.subr.mxu0 0.0
    %100 = vmatpush1.msra.mxu0 0.0
    %101 = vmatprep.subr.mxu0 0.0
    %102 = vmatpush1.msra.mxu0 0.0
    %103 = vmatprep.subr.mxu0 0.0
    %104 = vmatpush1.msra.mxu0 0.0
    %105 = vmatprep.subr.mxu0 0.0
    %106 = vmatpush1.msra.mxu0 0.0
    %107 = vmatprep.subr.mxu0 0.0
    %108 = vmatpush1.msra.mxu0 0.0
    %109 = vmatprep.subr.mxu0 0.0
    %110 = vmatpush1.msra.mxu0 0.0
    %111 = vmatprep.subr.mxu0 0.0
    %112 = vmatpush1.msra.mxu0 0.0
    %113 = vmatprep.mubr.f32.mxu0 0.0
    %114 = vmatmul.mubr.f32.gmra.mrb[0].mxu0 %v24
    %v115 = vpop.f32.mrb[0].mxu0
    %v116 = vadd.f32 %v47, %v115
    %v117 = vpop.f32.mrb[0].mxu0
    %118 = vmatprep.mubr.f32.mxu0 0.0
    %119 = vmatmul.mubr.f32.gmra.mrb[0].mxu0 %v25
    %v120 = vpop.f32.mrb[0].mxu0
    %v121 = vadd.f32 %v47, %v120
    %v122 = vpop.f32.mrb[0].mxu0
    %123 = vdwg.mxu0
    %v124 = vld [vmem:[#allocation2] sm:$0xff]
    %v125 = vld [vmem:[#allocation2 + $0x8] sm:$0xff]
    %126 = vmax.xlane.f32.xlu0 %v116
    %v127 = vpop.xlane.xlu0 %126
    %128 = vmax.xlane.f32.xlu0 %v121
    %v129 = vpop.xlane.xlu0 %128
    %v130 = vmax.f32 %v124, %v127
    %v131 = vmax.f32 %v125, %v129
    %v132 = vsub.f32 %v124, %v130
    %v133 = vsub.f32 %v125, %v131
    %v134 = vmul.f32 %v132, 1.442695
    %v135 = vpow.pop %v134
    %v136 = vmul.f32 %v133, 1.442695
    %v137 = vpow.pop %v136
    %139 = vset.pattern.permute.xlu0 0
    %140 = vperm.xlu0 %139, %v130
    %v141 = vpop.permute.xlu0 %140
    %144 = vset.pattern.permute.xlu0 0
    %145 = vperm.xlu0 %144, %v131
    %v146 = vpop.permute.xlu0 %145
    %v148 = vsub.f32 %v116, %v141
    %v149 = vsub.f32 %v121, %v146
    %v150 = vmul.f32 %v148, 1.442695
    %v151 = vpow.pop %v150
    %v152 = vmul.f32 %v149, 1.442695
    %v153 = vpow.pop %v152
    %vm154 = vcmask 7168
    %155 = vst.msk [vmem:[#allocation2] sm:$0xff] %vm154, %v130
    %156 = vst.msk [vmem:[#allocation2 + $0x8] sm:$0xff] %vm154, %v131
    %v157 = vld [vmem:[#allocation3] sm:$0xff]
    %v158 = vld [vmem:[#allocation3 + $0x8] sm:$0xff]
    %v159 = vmul.f32 %v135, %v157
    %v160 = vmul.f32 %v137, %v158
    %161 = vadd.xlane.f32.xlu0 %v151
    %v162 = vpop.xlane.xlu0 %161
    %163 = vadd.xlane.f32.xlu0 %v153
    %v164 = vpop.xlane.xlu0 %163
    %v165 = vadd.f32 %v159, %v162
    %v166 = vadd.f32 %v160, %v164
    %167 = vst.msk [vmem:[#allocation3] sm:$0xff] %vm154, %v165
    %168 = vst.msk [vmem:[#allocation3 + $0x8] sm:$0xff] %vm154, %v166
    %v169 = vld [vmem:[#allocation4] sm:$0xff]
    %v170 = vld [vmem:[#allocation4 + $0x8] sm:$0xff]
    %172 = vset.pattern.permute.xlu0 0
    %173 = vperm.xlu0 %172, %v135
    %v174 = vpop.permute.xlu0 %173
    %177 = vset.pattern.permute.xlu0 0
    %178 = vperm.xlu0 %177, %v137
    %v179 = vpop.permute.xlu0 %178
    %v181 = vmul.f32 %v169, %v174
    %v182 = vmul.f32 %v170, %v179
    %183 = vst [vmem:[#allocation4] sm:$0xff] %v181
    %184 = vst [vmem:[#allocation4 + $0x8] sm:$0xff] %v182
    %s185 = smul.u32 0, 128
    %s186 = sshra.s32 %s185, 7
    %s187 = sand.u32 %s185, 127
    %s188 = scalar_lea.vmem [#allocation4], %s186
    %189 = vst [vmem:[%s188] sm:$0xff] %v151
    %190 = vst [vmem:[%s188 + $0x8] sm:$0xff] %v153
    // Predicated region
    $region18: #{generator_forward.1} parent=1 // pred_check
      %p191 = pneg %p15
    $region19: #{generator_forward.1} parent=1 // pred_check_branch
      %193 = sbr.rel (%p191) target = $region21
    $region20: #{generator_forward.1} parent=1 // pred_region
      %v194 = vld [vmem:[#allocation3] sm:$0xff]
      %v195 = vld [vmem:[#allocation3 + $0x8] sm:$0xff]
      %v196 = vrcp.pop %v194
      %v197 = vrcp.pop %v195
      %v198 = vmul.f32 %v194, %v196
      %v199 = vmul.f32 %v195, %v197
      %v200 = vsub.f32 2.0, %v198
      %v201 = vsub.f32 2.0, %v199
      %v202 = vmul.f32 %v196, %v200
      %v203 = vmul.f32 %v197, %v201
      %v204 = vld [vmem:[#allocation4] sm:$0xff]
      %v205 = vld [vmem:[#allocation4 + $0x8] sm:$0xff]
      %207 = vset.pattern.permute.xlu0 0
      %208 = vperm.xlu0 %207, %v202
      %v209 = vpop.permute.xlu0 %208
      %212 = vset.pattern.permute.xlu0 0
      %213 = vperm.xlu0 %212, %v203
      %v214 = vpop.permute.xlu0 %213
      %v216 = vmul.f32 %v204, %v209
      %v217 = vmul.f32 %v205, %v214
      %218 = vst [vmem:[#allocation5] sm:$0xff] %v216
      %219 = vst [vmem:[#allocation5 + $0x8] sm:$0xff] %v217
    $region21: #{generator_forward.1} parent=1 // pred_fallthru
      _
    // Predicated region
    $region22: #{generator_forward.1} parent=1 // pred_check
      _
    $region23: #{generator_forward.1} parent=1 // pred_check_branch
      %221 = sbr.rel (0) target = $region25
    $region24: #{generator_forward.1} parent=1 // pred_region
      %s223 = ssub.s32 256, 256
      %224 = vsyncadd [#allocation6], %s223
      %s225 = sshll.u32 [#allocation5], 4
      %s226 = int_to_ptr.vmem [resolvable:$true] %s225
      %231 = dma.vmem_to_hbm [thread:$0]  %s226, 256, %s3, [#allocation6], 128, 128, 8
    $region25: #{generator_forward.1} parent=1 // pred_fallthru
      _
    // Predicated region
    $region26: #{generator_forward.1} parent=1 // pred_check
      _
    $region27: #{generator_forward.1} parent=1 // pred_check_branch
      %233 = sbr.rel (0) target = $region29
    $region28: #{generator_forward.1} parent=1 // pred_region
      %234 = dma.done [#allocation6], 256
    $region29: #{generator_forward.1} parent=1 // pred_fallthru
      _
    %235 = vsyncpa [#allocation6], 1

</llo_original>
